<compile_context>
chip_gen: v6e
topology: v6e:2x2x1
jax: 0.10.0
libtpu: 0.0.40
codegen_flags: <defaults>
</compile_context>

<pallas_src>
import jax
import jax.numpy as jnp
from jax.experimental import pallas as pl
from jax.experimental.pallas import tpu as pltpu


def _round_up(x, m):
    return (x + m - 1) // m * m


def prepare_params(params):
    """One-time preprocessing, hoisted out of the per-step forward.

    bf16 cast of the embedding table (halves the gathered hidden-state traffic) and of both
    MXU weight operands; biases stay f32 for the f32-accumulate epilogue.
    """
    return {
        "embedding": params["embedding"].astype(jnp.bfloat16),
        "w_enc":     params["w_enc"].astype(jnp.bfloat16),
        "b_enc":     params["b_enc"].astype(jnp.float32),
        "w_mel_t":   params["w_mel_t"].astype(jnp.bfloat16),
        "b_mel":     params["b_mel"].astype(jnp.float32),
    }


def _make_kernel(bf16_epilogue):
    def kernel(x_ref, mask_ref, wenc_ref, benc_ref, wmel_ref, bmel_ref, o_ref):
        # Synthetic base-model encoder layer: tanh(x @ Wenc + benc), bf16 MXU / f32 accumulate.
        acc = jnp.dot(x_ref[...], wenc_ref[...], preferred_element_type=jnp.float32)
        if bf16_epilogue:
            # v6e/v7x: bf16 VPU/EUP path -- halves VALU/EUP work and h's live footprint.
            h = jnp.tanh((acc + benc_ref[...]).astype(jnp.bfloat16))
        else:
            # v5e: no bf16 VPU/EUP -- keep the epilogue in f32, cast only for the MXU.
            h = jnp.tanh(acc + benc_ref[...]).astype(jnp.bfloat16)
        # mel_projection (nn.Linear): y = h @ W^T + b  (W kept pre-transposed as (H, M)).
        mel = jnp.dot(h, wmel_ref[...], preferred_element_type=jnp.float32)
        # Per-row attention mask commutes with the row-wise matmul -> apply after the MXU push.
        o_ref[...] = (mask_ref[...] * mel + bmel_ref[...]).astype(o_ref.dtype)
    return kernel


def _tile_and_vmem_budget(n_rows, tm_request):
    """Pick the row tile and scoped-VMEM budget per TPU generation.

    v5e/v6e: 128 MiB VMEM -> keep the requested (large) tile and an 80 MiB budget.
    v7x (or unknown): 64 MiB per TensorCore -> cap the tile at 256 and budget 40 MiB.
    Also guarantee >=2 row tiles whenever there is enough work so the "parallel" grid
    axis can shard rows across both TensorCores on v7x.
    """
    try:
        vmem_bytes = int(pltpu.get_tpu_info().vmem_capacity_bytes)
    except Exception:
        vmem_bytes = 64 * 1024 * 1024  # conservative fallback (v7x per-TC)
    if vmem_bytes >= 96 * 1024 * 1024:                       # v5e / v6e
        tm_cap, vmem_limit = tm_request, 80 * 1024 * 1024
    else:                                                    # v7x or unknown
        tm_cap, vmem_limit = min(tm_request, 256), 40 * 1024 * 1024

    row_align = 16  # bf16 sublane packing: keep row tiles 16-aligned
    if row_align < n_rows <= 2 * tm_cap:
        tm_eff = _round_up(pl.cdiv(n_rows, 2), row_align)    # split so both v7x TCs get work
    else:
        tm_eff = min(tm_cap, _round_up(n_rows, row_align))
    return tm_eff, vmem_limit


def tts_forward(prepared, input_ids, attention_mask=None, *, tm=512, bf16_epilogue=True):
    # Embedding gather stays in XLA (glue); the table was pre-cast to bf16 once in prepare_params.
    emb = prepared["embedding"][input_ids]                    # (B, S, H) bf16
    B, S, H = emb.shape
    M = prepared["w_mel_t"].shape[1]
    n_rows = B * S

    x = emb.reshape(n_rows, H)                                # contiguous reshape, no copy
    if attention_mask is None:
        mask = jnp.ones((n_rows, 1), jnp.float32)
    else:
        mask = attention_mask.reshape(n_rows, 1).astype(jnp.float32)

    tm_eff, vmem_limit = _tile_and_vmem_budget(n_rows, tm)
    grid = (pl.cdiv(n_rows, tm_eff),)                         # partial edge tile, no row padding

    cost = pl.CostEstimate(
        flops=2 * n_rows * H * (H + M),
        transcendentals=n_rows * H,                           # tanh
        bytes_accessed=(n_rows * H * 2 + n_rows * 4           # x (bf16), mask (f32)
                        + H * H * 2 + H * 4 + H * M * 2 + M * 4   # resident weights/biases
                        + n_rows * M * 4),                    # f32 mel output
    )

    out = pl.pallas_call(
        _make_kernel(bf16_epilogue),
        out_shape=jax.ShapeDtypeStruct((n_rows, M), jnp.float32),
        grid_spec=pltpu.PrefetchScalarGridSpec(
            num_scalar_prefetch=0,
            grid=grid,
            in_specs=[
                pl.BlockSpec((tm_eff, H), lambda i: (i, 0)),  # hidden-state rows (bf16, full-H)
                pl.BlockSpec((tm_eff, 1), lambda i: (i, 0)),  # per-row attention mask (f32)
                pl.BlockSpec((H, H), lambda i: (0, 0)),       # encoder weight (resident)
                pl.BlockSpec((1, H), lambda i: (0, 0)),       # encoder bias
                pl.BlockSpec((H, M), lambda i: (0, 0)),       # mel_projection weight^T (resident)
                pl.BlockSpec((1, M), lambda i: (0, 0)),       # mel_projection bias
            ],
            out_specs=pl.BlockSpec((tm_eff, M), lambda i: (i, 0)),
        ),
        compiler_params=pltpu.CompilerParams(
            dimension_semantics=("parallel",),                # row tiles shard across v7x TCs
            vmem_limit_bytes=vmem_limit,
        ),
        cost_estimate=cost,
    )(x, mask, prepared["w_enc"], prepared["b_enc"], prepared["w_mel_t"], prepared["b_mel"])

    return out.reshape(B, S, M)                               # contiguous reshape, no copy


def init_params(key, vocab_size, hidden_size, mel_bins):
    k0, k1, k2, k3, k4 = jax.random.split(key, 5)
    return {
        "embedding": jax.random.normal(k0, (vocab_size, hidden_size), jnp.float32) * 0.02,
        "w_enc":     jax.random.normal(k1, (hidden_size, hidden_size), jnp.float32) * 0.1,
        "b_enc":     jax.random.normal(k2, (1, hidden_size), jnp.float32) * 0.01,
        # nn.Linear stores (mel_bins, hidden_size); we keep the transposed (H, M) form.
        "w_mel_t":   jax.random.normal(k3, (hidden_size, mel_bins), jnp.float32) * 0.1,
        "b_mel":     jax.random.normal(k4, (1, mel_bins), jnp.float32) * 0.01,
    }


def _reference(params, input_ids, attention_mask):
    emb = params["embedding"][input_ids].astype(jnp.float32)
    h = jnp.tanh(emb @ params["w_enc"] + params["b_enc"][0])
    if attention_mask is not None:
        h = h * attention_mask[..., None].astype(jnp.float32)
    return h @ params["w_mel_t"] + params["b_mel"][0]


if __name__ == "__main__":
    key = jax.random.PRNGKey(0)
    k_params, k_ids, k_ids2, k_mask2 = jax.random.split(key, 4)

    # -- test 1: tiny config (module-scale shapes) --
    B, S, H, M, V = 2, 8, 32, 80, 100
    raw = init_params(k_params, vocab_size=V, hidden_size=H, mel_bins=M)
    prepared = prepare_params(raw)          # one-time prep, outside the per-step path

    fwd = jax.jit(tts_forward, static_argnames=("tm", "bf16_epilogue"))

    input_ids = jax.random.randint(k_ids, (B, S), 0, V, dtype=jnp.int32)
    attention_mask = jnp.ones((B, S), jnp.int32).at[:, -2:].set(0)

    mel = jax.block_until_ready(fwd(prepared, input_ids, attention_mask))
    ref = _reference(raw, input_ids, attention_mask)
    assert mel.shape == (B, S, M)
    assert jnp.allclose(mel, ref, atol=5e-3, rtol=3e-2)

    # f32-epilogue path (v5e profile) must also compile and agree
    mel_f32 = jax.block_until_ready(fwd(prepared, input_ids, attention_mask, bf16_epilogue=False))
    assert jnp.allclose(mel_f32, ref, atol=5e-3, rtol=3e-2)

    # -- test 2: multi-tile grid with a partial edge tile (n_rows=300 -> 2 tiles of 160) --
    B2, S2 = 3, 100
    ids2 = jax.random.randint(k_ids2, (B2, S2), 0, V, dtype=jnp.int32)
    mask2 = (jax.random.uniform(k_mask2, (B2, S2)) > 0.2).astype(jnp.int32)
    mel2 = jax.block_until_ready(fwd(prepared, ids2, mask2))
    ref2 = _reference(raw, ids2, mask2)
    assert mel2.shape == (B2, S2, M)
    assert jnp.allclose(mel2, ref2, atol=5e-3, rtol=3e-2)

    print("KERNEL_OK")
</pallas_src>

<mosaic_0001>
module attributes {stable_mosaic.version = 11 : i64} {
  func.func @kernel(%arg0: i32, %arg1: memref<16x32xbf16, #tpu.memory_space<vmem>>, %arg2: memref<16x1xf32, #tpu.memory_space<vmem>>, %arg3: memref<32x32xbf16, #tpu.memory_space<vmem>>, %arg4: memref<1x32xf32, #tpu.memory_space<vmem>>, %arg5: memref<32x80xbf16, #tpu.memory_space<vmem>>, %arg6: memref<1x80xf32, #tpu.memory_space<vmem>>, %arg7: memref<16x80xf32, #tpu.memory_space<vmem>>) attributes {dimension_semantics = [#tpu.dimension_semantics<parallel>], iteration_bounds = array<i64: 1>, scalar_prefetch = 0 : i64, scratch_operands = 0 : i64, tpu.core_type = #tpu.core_type<tc>, window_params = [{transform_indices = @transform_0, window_bounds = array<i64: 16, 32>}, {transform_indices = @transform_1, window_bounds = array<i64: 16, 1>}, {pipeline_mode = #tpu.pipeline_mode<synchronous>, transform_indices = @transform_2, window_bounds = array<i64: 32, 32>}, {pipeline_mode = #tpu.pipeline_mode<synchronous>, transform_indices = @transform_3, window_bounds = array<i64: 1, 32>}, {pipeline_mode = #tpu.pipeline_mode<synchronous>, transform_indices = @transform_4, window_bounds = array<i64: 32, 80>}, {pipeline_mode = #tpu.pipeline_mode<synchronous>, transform_indices = @transform_5, window_bounds = array<i64: 1, 80>}, {transform_indices = @transform_6, window_bounds = array<i64: 16, 80>}]} {
    %c0 = arith.constant 0 : index
    %c0_0 = arith.constant 0 : index
    %0 = vector.load %arg1[%c0, %c0_0] : memref<16x32xbf16, #tpu.memory_space<vmem>>, vector<16x32xbf16>
    %c0_1 = arith.constant 0 : index
    %c0_2 = arith.constant 0 : index
    %1 = vector.load %arg3[%c0_1, %c0_2] : memref<32x32xbf16, #tpu.memory_space<vmem>>, vector<32x32xbf16>
    %cst = arith.constant dense<0.000000e+00> : vector<16x32xf32>
    %2 = tpu.matmul %0, %1, %cst {dimension_numbers = #tpu.dot_dimension_numbers<[1], [0], [0], [1], [0, 0, 1, 1], [], []>} : vector<16x32xbf16>, vector<32x32xbf16>, vector<16x32xf32> -> vector<16x32xf32>
    %c0_3 = arith.constant 0 : index
    %c0_4 = arith.constant 0 : index
    %3 = vector.load %arg4[%c0_3, %c0_4] : memref<1x32xf32, #tpu.memory_space<vmem>>, vector<1x32xf32>
    %4 = vector.broadcast %3 : vector<1x32xf32> to vector<16x32xf32>
    %5 = arith.addf %2, %4 : vector<16x32xf32>
    %6 = arith.truncf %5 : vector<16x32xf32> to vector<16x32xbf16>
    %7 = math.tanh %6 : vector<16x32xbf16>
    %c0_5 = arith.constant 0 : index
    %c0_6 = arith.constant 0 : index
    %8 = vector.load %arg5[%c0_5, %c0_6] : memref<32x80xbf16, #tpu.memory_space<vmem>>, vector<32x80xbf16>
    %cst_7 = arith.constant dense<0.000000e+00> : vector<16x80xf32>
    %9 = tpu.matmul %7, %8, %cst_7 {dimension_numbers = #tpu.dot_dimension_numbers<[1], [0], [0], [1], [0, 0, 1, 1], [], []>} : vector<16x32xbf16>, vector<32x80xbf16>, vector<16x80xf32> -> vector<16x80xf32>
    %c0_8 = arith.constant 0 : index
    %c0_9 = arith.constant 0 : index
    %10 = vector.load %arg2[%c0_8, %c0_9] : memref<16x1xf32, #tpu.memory_space<vmem>>, vector<16x1xf32>
    %11 = vector.broadcast %10 : vector<16x1xf32> to vector<16x80xf32>
    %12 = arith.mulf %11, %9 : vector<16x80xf32>
    %c0_10 = arith.constant 0 : index
    %c0_11 = arith.constant 0 : index
    %13 = vector.load %arg6[%c0_10, %c0_11] : memref<1x80xf32, #tpu.memory_space<vmem>>, vector<1x80xf32>
    %14 = vector.broadcast %13 : vector<1x80xf32> to vector<16x80xf32>
    %15 = arith.addf %12, %14 : vector<16x80xf32>
    %c0_12 = arith.constant 0 : index
    %c0_13 = arith.constant 0 : index
    %16 = vector.load %arg7[%c0_12, %c0_13] : memref<16x80xf32, #tpu.memory_space<vmem>>, vector<16x80xf32>
    tpu.vector_store %arg7[%c0_12, %c0_13], %15 {strides = array<i32>} : memref<16x80xf32, #tpu.memory_space<vmem>>, vector<16x80xf32>,
    return
  }
  func.func @transform_0(%arg0: i32) -> (i32, i32) {
    %c0_i32 = arith.constant 0 : i32
    %c0_i32_0 = arith.constant 0 : i32
    return %arg0, %c0_i32 : i32, i32
  }
  func.func @transform_1(%arg0: i32) -> (i32, i32) {
    %c0_i32 = arith.constant 0 : i32
    %c0_i32_0 = arith.constant 0 : i32
    return %arg0, %c0_i32 : i32, i32
  }
  func.func @transform_2(%arg0: i32) -> (i32, i32) {
    %c0_i32 = arith.constant 0 : i32
    %c0_i32_0 = arith.constant 0 : i32
    %c0_i32_1 = arith.constant 0 : i32
    return %c0_i32, %c0_i32_0 : i32, i32
  }
  func.func @transform_3(%arg0: i32) -> (i32, i32) {
    %c0_i32 = arith.constant 0 : i32
    %c0_i32_0 = arith.constant 0 : i32
    %c0_i32_1 = arith.constant 0 : i32
    return %c0_i32, %c0_i32_0 : i32, i32
  }
  func.func @transform_4(%arg0: i32) -> (i32, i32) {
    %c0_i32 = arith.constant 0 : i32
    %c0_i32_0 = arith.constant 0 : i32
    %c0_i32_1 = arith.constant 0 : i32
    return %c0_i32, %c0_i32_0 : i32, i32
  }
  func.func @transform_5(%arg0: i32) -> (i32, i32) {
    %c0_i32 = arith.constant 0 : i32
    %c0_i32_0 = arith.constant 0 : i32
    %c0_i32_1 = arith.constant 0 : i32
    return %c0_i32, %c0_i32_0 : i32, i32
  }
  func.func @transform_6(%arg0: i32) -> (i32, i32) {
    %c0_i32 = arith.constant 0 : i32
    %c0_i32_0 = arith.constant 0 : i32
    return %arg0, %c0_i32 : i32, i32
  }
}

</mosaic_0001>

<llo_original>
// kernel: tts_forward.1
$region0: #{tts_forward.1}
  #allocation0 [shape = 'u32[]', space=smem, size = 0x4, offset = 0x4, fixed_abs, tag = 'smem constant byte address 0x4 - core index']
  #allocation1 [shape = 'u32[144,128]{1,0:T(1,128)}', space=vmem, size = 0x12000, scoped, tag = 'internal scratch']
  %s0 = inlined_call_operand.vmem [shape: bf16[16,32], index: 0, kind: input, shape index: {}]
  %s1 = inlined_call_operand.vmem [shape: f32[16,1], index: 1, kind: input, shape index: {}]
  %s2 = inlined_call_operand.vmem [shape: bf16[32,32], index: 2, kind: input, shape index: {}]
  %s3 = inlined_call_operand.vmem [shape: f32[1,32], index: 3, kind: input, shape index: {}]
  %s4 = inlined_call_operand.vmem [shape: bf16[32,80], index: 4, kind: input, shape index: {}]
  %s5 = inlined_call_operand.vmem [shape: f32[1,80], index: 5, kind: input, shape index: {}]
  %s6 = inlined_call_operand.hbm [shape: f32[16,80], index: 6, kind: output, shape index: {}]
  %s7 = sld [smem:[#allocation0]]
  $region34: #{tts_forward.1} parent=0
    _
  %s9 = ssub.s32 1, %s7
  %s10 = scalar_select 0, %s9, %s7
  $region1: #{tts_forward.1} parent=0
    #allocation2 [shape = 'u8[8192]{0}', space=vmem, size = 0x2000, scoped, tag = 'output window, operand 0, single buffered']
    #allocation3 [shape = 's32[1]{0}', space=sflag, size = 0x4, scoped, tag = 'scoped memory for tts_forward.1']
    %11 = vsyncpa [#allocation3], 0
    // Predicated region
    $region2: #{tts_forward.1} parent=1 // pred_check
      _
    $region3: #{tts_forward.1} parent=1 // pred_check_branch
      %13 = sbr.rel (0) target = $region5
    $region4: #{tts_forward.1} parent=1 // pred_region
      _
    $region5: #{tts_forward.1} parent=1 // pred_fallthru
      _
    // Predicated region
    $region6: #{tts_forward.1} parent=1 // pred_check
      _
    $region7: #{tts_forward.1} parent=1 // pred_check_branch
      %15 = sbr.rel (0) target = $region9
    $region8: #{tts_forward.1} parent=1 // pred_region
      _
    $region9: #{tts_forward.1} parent=1 // pred_fallthru
      _
    // Predicated region
    $region10: #{tts_forward.1} parent=1 // pred_check
      _
    $region11: #{tts_forward.1} parent=1 // pred_check_branch
      %17 = sbr.rel (0) target = $region13
    $region12: #{tts_forward.1} parent=1 // pred_region
      _
    $region13: #{tts_forward.1} parent=1 // pred_fallthru
      _
    // Predicated region
    $region14: #{tts_forward.1} parent=1 // pred_check
      _
    $region15: #{tts_forward.1} parent=1 // pred_check_branch
      %19 = sbr.rel (0) target = $region17
    $region16: #{tts_forward.1} parent=1 // pred_region
      _
    $region17: #{tts_forward.1} parent=1 // pred_fallthru
      _
    // Predicated region
    $region18: #{tts_forward.1} parent=1 // pred_check
      _
    $region19: #{tts_forward.1} parent=1 // pred_check_branch
      %21 = sbr.rel (0) target = $region21
    $region20: #{tts_forward.1} parent=1 // pred_region
      _
    $region21: #{tts_forward.1} parent=1 // pred_fallthru
      _
    // Predicated region
    $region22: #{tts_forward.1} parent=1 // pred_check
      _
    $region23: #{tts_forward.1} parent=1 // pred_check_branch
      %23 = sbr.rel (0) target = $region25
    $region24: #{tts_forward.1} parent=1 // pred_region
      _
    $region25: #{tts_forward.1} parent=1 // pred_fallthru
      _
    %v25 = vld [vmem:[%s0] sm:$0xf]
    %v26 = vld [vmem:[%s0 + $0x4] sm:$0xf]
    %v27 = vld [vmem:[%s2] sm:$0xf]
    %v28 = vld [vmem:[%s2 + $0x4] sm:$0xf]
    %v29 = vld [vmem:[%s2 + $0x8] sm:$0xf]
    %v30 = vld [vmem:[%s2 + $0xc] sm:$0xf]
    %v31 = vld [vmem:[%s3] sm:$0x1]
    %v33 = vlaneseq
    %v34 = vshrl.u32 %v33, 7
    %v35 = vsub.s32 0, %v34
    %v36 = vrot.slane %v31, %v35
    %v40 = vunpack.c.l.b16 %v25
    %v41 = vunpack.c.l.b16 %v26
    %v42 = vpack.c.b16 %v41, %v40
    %v47 = vunpack.c.l.b16 %v27
    %v48 = vunpack.c.l.b16 %v28
    %v49 = vunpack.c.l.b16 %v29
    %v50 = vunpack.c.l.b16 %v30
    %v51 = vpack.c.b16 %v48, %v47
    %v52 = vpack.c.b16 %v50, %v49
    %vm55 = vcmask 261120
    %v57 = vsel %vm55, %v42, 0
    %59 = vmatprep.subr.bf16.mxu0 0
    %60 = vmatpush1.bf16.msra.mxu0 0
    %61 = vmatprep.subr.bf16.mxu0 0
    %62 = vmatpush1.bf16.msra.mxu0 0
    %63 = vmatprep.subr.bf16.mxu0 0
    %64 = vmatpush1.bf16.msra.mxu0 0
    %65 = vmatprep.subr.bf16.mxu0 0
    %66 = vmatpush1.bf16.msra.mxu0 0
    %67 = vmatprep.subr.bf16.mxu0 0
    %68 = vmatpush1.bf16.msra.mxu0 0
    %69 = vmatprep.subr.bf16.mxu0 0
    %70 = vmatpush1.bf16.msra.mxu0 0
    %71 = vmatprep.subr.bf16.mxu0 0
    %72 = vmatpush1.bf16.msra.mxu0 %v52
    %73 = vmatprep.subr.bf16.mxu0 0
    %74 = vmatpush1.bf16.msra.mxu0 %v51
    %75 = vmatprep.subr.bf16.mxu0 0
    %76 = vmatpush2.bf16.msra.mxu0 0
    %77 = vmatprep.subr.bf16.mxu0 0
    %78 = vmatpush2.bf16.msra.mxu0 0
    %79 = vmatprep.subr.bf16.mxu0 0
    %80 = vmatpush2.bf16.msra.mxu0 0
    %81 = vmatprep.subr.bf16.mxu0 0
    %82 = vmatpush2.bf16.msra.mxu0 0
    %83 = vmatprep.subr.bf16.mxu0 0
    %84 = vmatpush2.bf16.msra.mxu0 0
    %85 = vmatprep.subr.bf16.mxu0 0
    %86 = vmatpush2.bf16.msra.mxu0 0
    %87 = vmatprep.subr.bf16.mxu0 0
    %88 = vmatpush2.bf16.msra.mxu0 0
    %89 = vmatprep.subr.bf16.mxu0 0
    %90 = vmatpush2.bf16.msra.mxu0 0
    %91 = vmatprep.mubr.bf16.mxu0 0
    %92 = vmatmul.mubr.bf16.gmra.mxu0 %v57
    %v93 = vpop.f32.mrf.mxu0
    %v94 = vadd.f32 %v36, %v93
    %v95 = vpop.f32.mrf.mxu0
    %v96 = vpop.f32.mrf.mxu0
    %v97 = vadd.f32 %v36, %v96
    %v98 = vpop.f32.mrf.mxu0
    %99 = vdwg.mxu0
    %v100 = vpack.c.bf16 %v97, %v94
    %v101 = vtanh.bf16.pop %v100
    %v102 = vld [vmem:[%s4] sm:$0xf]
    %v103 = vld [vmem:[%s4 + $0x4] sm:$0xf]
    %v104 = vld [vmem:[%s4 + $0x8] sm:$0xf]
    %v105 = vld [vmem:[%s4 + $0xc] sm:$0xf]
    %v110 = vunpack.c.l.b16 %v102
    %v111 = vunpack.c.l.b16 %v103
    %v112 = vunpack.c.l.b16 %v104
    %v113 = vunpack.c.l.b16 %v105
    %v114 = vpack.c.b16 %v111, %v110
    %v115 = vpack.c.b16 %v113, %v112
    %v119 = vsel %vm55, %v101, 0
    %121 = vmatprep.subr.bf16.mxu0 0
    %122 = vmatpush1.bf16.msra.mxu0 0
    %123 = vmatprep.subr.bf16.mxu0 0
    %124 = vmatpush1.bf16.msra.mxu0 0
    %125 = vmatprep.subr.bf16.mxu0 0
    %126 = vmatpush1.bf16.msra.mxu0 0
    %127 = vmatprep.subr.bf16.mxu0 0
    %128 = vmatpush1.bf16.msra.mxu0 0
    %129 = vmatprep.subr.bf16.mxu0 0
    %130 = vmatpush1.bf16.msra.mxu0 0
    %131 = vmatprep.subr.bf16.mxu0 0
    %132 = vmatpush1.bf16.msra.mxu0 0
    %133 = vmatprep.subr.bf16.mxu0 0
    %134 = vmatpush1.bf16.msra.mxu0 %v115
    %135 = vmatprep.subr.bf16.mxu0 0
    %136 = vmatpush1.bf16.msra.mxu0 %v114
    %137 = vmatprep.subr.bf16.mxu0 0
    %138 = vmatpush2.bf16.msra.mxu0 0
    %139 = vmatprep.subr.bf16.mxu0 0
    %140 = vmatpush2.bf16.msra.mxu0 0
    %141 = vmatprep.subr.bf16.mxu0 0
    %142 = vmatpush2.bf16.msra.mxu0 0
    %143 = vmatprep.subr.bf16.mxu0 0
    %144 = vmatpush2.bf16.msra.mxu0 0
    %145 = vmatprep.subr.bf16.mxu0 0
    %146 = vmatpush2.bf16.msra.mxu0 0
    %147 = vmatprep.subr.bf16.mxu0 0
    %148 = vmatpush2.bf16.msra.mxu0 0
    %149 = vmatprep.subr.bf16.mxu0 0
    %150 = vmatpush2.bf16.msra.mxu0 0
    %151 = vmatprep.subr.bf16.mxu0 0
    %152 = vmatpush2.bf16.msra.mxu0 0
    %153 = vmatprep.mubr.bf16.mxu0 0
    %154 = vmatmul.mubr.bf16.gmra.mxu0 %v119
    %v155 = vpop.f32.mrf.mxu0
    %v156 = vadd.f32 0.0, %v155
    %v157 = vpop.f32.mrf.mxu0
    %v158 = vpop.f32.mrf.mxu0
    %v159 = vadd.f32 0.0, %v158
    %v160 = vpop.f32.mrf.mxu0
    %161 = vdwg.mxu0
    %v162 = vld [vmem:[%s1] sm:$0xff]
    %v163 = vld [vmem:[%s1 + $0x8] sm:$0xff]
    %165 = vset.pattern.permute.xlu0 0
    %166 = vperm.xlu0 %165, %v162
    %v167 = vpop.permute.xlu0 %166
    %170 = vset.pattern.permute.xlu0 0
    %171 = vperm.xlu0 %170, %v163
    %v172 = vpop.permute.xlu0 %171
    %v174 = vmul.f32 %v167, %v156
    %v175 = vmul.f32 %v172, %v159
    %v176 = vld [vmem:[%s5] sm:$0x1]
    %v178 = vlaneseq
    %v179 = vshrl.u32 %v178, 7
    %v180 = vsub.s32 0, %v179
    %v181 = vrot.slane %v176, %v180
    %v183 = vadd.f32 %v174, %v181
    %v184 = vadd.f32 %v175, %v181
    %vm185 = vcmask 654336
    %186 = vst.msk [vmem:[#allocation2] sm:$0xff] %vm185, %v183
    %187 = vst.msk [vmem:[#allocation2 + $0x8] sm:$0xff] %vm185, %v184
    // Predicated region
    $region26: #{tts_forward.1} parent=1 // pred_check
      _
    $region27: #{tts_forward.1} parent=1 // pred_check_branch
      %189 = sbr.rel (0) target = $region29
    $region28: #{tts_forward.1} parent=1 // pred_region
      %s191 = ssub.s32 256, 256
      %192 = vsyncadd [#allocation3], %s191
      %s193 = sshll.u32 [#allocation2], 4
      %s194 = int_to_ptr.vmem [resolvable:$true] %s193
      %199 = dma.vmem_to_hbm [thread:$0]  %s194, 256, %s6, [#allocation3], 128, 128, 8
    $region29: #{tts_forward.1} parent=1 // pred_fallthru
      _
    // Predicated region
    $region30: #{tts_forward.1} parent=1 // pred_check
      _
    $region31: #{tts_forward.1} parent=1 // pred_check_branch
      %201 = sbr.rel (0) target = $region33
    $region32: #{tts_forward.1} parent=1 // pred_region
      %202 = dma.done [#allocation3], 256
    $region33: #{tts_forward.1} parent=1 // pred_fallthru
      _
    %203 = vsyncpa [#allocation3], 1

</llo_original>
